<compile_context>
chip_gen: v7x
topology: tpu7x:2x2x1
jax: 0.10.0
libtpu: 0.0.40
codegen_flags: <defaults>
</compile_context>

<pallas_src>
import functools
import numpy as np
import jax
import jax.numpy as jnp
from jax.experimental import pallas as pl
from jax.experimental.pallas import tpu as pltpu

LOG2 = float(np.log(2.0))
LANE = 128        # lane width: feature dims padded to multiples of this
SUBLANE = 8       # fp32 sublane width: batch tile must be a multiple of this
MAX_TILE_B = 512  # batch rows per grid step (amortizes step overhead, fills MXU M)


def _round_up(x, m):
    return (x + m - 1) // m * m


def _softplus_stable(y):
    # Numerically-stable softplus; carlosPlus's affine part (2*(.) - 2*log2) is folded
    # into the following layer's weights/bias at prep time, so only softplus remains here.
    return jnp.maximum(y, 0.0) + jnp.log1p(jnp.exp(-jnp.abs(y)))


def _fused_mlp_kernel(*refs, n_layers):
    """Fused whole-MLP kernel for one batch tile.

    refs = (x_ref, w0_ref, b0_ref, w1_ref, b1_ref, ..., o_ref)
      x_ref : [TILE_B, D0_pad]   fp32  (VMEM, streamed per grid step)
      wi_ref: [Di_pad, Di+1_pad] bf16  (VMEM-resident across grid steps, single-buffered)
      bi_ref: [1, Di+1_pad]      fp32  (VMEM-resident across grid steps, single-buffered)
      o_ref : [TILE_B, Dlast_pad] fp32 (VMEM, streamed per grid step)
    """
    x_ref = refs[0]
    o_ref = refs[-1]
    wb = refs[1:-1]

    h = x_ref[...]  # fp32 activations throughout
    for i in range(n_layers):
        w = wb[2 * i][...]          # bf16 weights (MXU operand)
        b = wb[2 * i + 1][...]      # fp32 bias row
        h = jnp.dot(h.astype(jnp.bfloat16), w,
                    preferred_element_type=jnp.float32) + b
        if i < n_layers - 1:        # final Linear has no activation
            h = _softplus_stable(h)
    o_ref[...] = h.astype(o_ref.dtype)


def prepare_encoder_params(params):
    """One-time prep of PyTorch-layout [out, in] weights:

      * fold carlosPlus's affine part of the PRECEDING activation into every layer
        after the first:  (2*(sp(h)-log2)) @ W.T + b  ==  sp(h) @ (2W).T + (b - 2*log2*sum_in W)
        (exact; padded weight rows are zero, so padded-lane softplus(0)=log2 is annihilated)
      * transpose to [in, out] and zero-pad every feature dim to a multiple of 128 lanes
      * cast weights to bf16 (MXU operands); biases stay fp32.
    """
    prepped = []
    for idx, (w, b) in enumerate(params):
        w = jnp.asarray(w, jnp.float32)
        b = jnp.asarray(b, jnp.float32)
        if idx > 0:
            b = b - 2.0 * LOG2 * jnp.sum(w, axis=1)   # fold done in fp32 on real rows
            w = 2.0 * w
        dout, din = w.shape
        din_p, dout_p = _round_up(din, LANE), _round_up(dout, LANE)
        w_t = jnp.zeros((din_p, dout_p), jnp.float32).at[:din, :dout].set(w.T)
        b_p = jnp.zeros((1, dout_p), jnp.float32).at[0, :dout].set(b)
        prepped.append((w_t.astype(jnp.bfloat16), b_p))
    return prepped


def _choose_tile_b(batch):
    """Balanced batch tile: multiple of 8, capped at MAX_TILE_B, and >=2 grid steps for
    B > 16 so v7x's two TensorCores both get work under the 'parallel' grid axis."""
    if batch <= 2 * SUBLANE:
        return _round_up(max(batch, 1), SUBLANE)
    n_steps = max(2, -(-batch // MAX_TILE_B))
    return min(_round_up(-(-batch // n_steps), SUBLANE), MAX_TILE_B)


@functools.partial(jax.jit, static_argnames=("z_dim",))
def encoder_forward(x, prepped_params, z_dim):
    """Fused forward pass. x: [B, nInputs]; prepped_params from prepare_encoder_params."""
    n_layers = len(prepped_params)
    B, Din = x.shape
    din_p = prepped_params[0][0].shape[0]
    dout_p = prepped_params[-1][0].shape[1]

    tile_b = _choose_tile_b(B)
    b_pad = _round_up(B, tile_b)

    x = x.astype(jnp.float32)
    if b_pad != B or din_p != Din:
        # zero padding propagates exactly (padded lanes stay 0 pre-activation, and
        # padded weight rows annihilate the softplus(0) values after activation)
        x_p = jnp.zeros((b_pad, din_p), jnp.float32).at[:B, :Din].set(x)
    else:
        x_p = x   # skip the extra HBM read+write when already aligned

    grid = (b_pad // tile_b,)

    def _resident_spec(shape):
        # Invariant blocks (constant index_map) — single buffer, nothing to pipeline.
        try:
            return pl.BlockSpec(shape, lambda i: (0, 0), pipeline_mode=pl.Buffered(1))
        except TypeError:   # fallback for BlockSpec versions without pipeline_mode
            return pl.BlockSpec(shape, lambda i: (0, 0))

    in_specs = [pl.BlockSpec((tile_b, din_p), lambda i: (i, 0))]
    flat_args = [x_p]
    for w_t, b2 in prepped_params:
        in_specs.append(_resident_spec(w_t.shape))
        in_specs.append(_resident_spec(b2.shape))
        flat_args.extend((w_t, b2))
    out_spec = pl.BlockSpec((tile_b, dout_p), lambda i: (i, 0))

    # Exact VMEM accounting:
    #   1x resident weights/biases (Buffered(1)), 2x double-buffered x/out tiles,
    #   the two largest live fp32 activation tiles, plus a 2 MiB margin.
    resident = sum(int(w.size) * w.dtype.itemsize + int(b.size) * b.dtype.itemsize
                   for w, b in prepped_params)
    streamed = 2 * (tile_b * din_p + tile_b * dout_p) * 4
    feat_p = [din_p] + [int(w.shape[1]) for w, _ in prepped_params]
    live_h = sum(sorted(tile_b * d * 4 for d in feat_p)[-2:])
    vmem_bytes = int(max(resident + streamed + live_h + (2 << 20), 4 << 20))

    out = pl.pallas_call(
        functools.partial(_fused_mlp_kernel, n_layers=n_layers),
        out_shape=jax.ShapeDtypeStruct((b_pad, dout_p), jnp.float32),
        grid=grid,
        in_specs=in_specs,
        out_specs=out_spec,
        compiler_params=pltpu.CompilerParams(
            dimension_semantics=("parallel",),   # batch steps shard across v7x's 2 TCs
            vmem_limit_bytes=vmem_bytes,
        ),
    )(*flat_args)

    return out[:B, :z_dim]


def init_encoder_params(key, n_inputs, z_dim, hidden_layers):
    """Deterministic init mimicking nn.Linear's U(-1/sqrt(fan_in), 1/sqrt(fan_in))."""
    dims = [n_inputs] + list(hidden_layers) + [z_dim]
    params = []
    for i in range(len(dims) - 1):
        fan_in, fan_out = dims[i], dims[i + 1]
        key, kw, kb = jax.random.split(key, 3)
        bound = 1.0 / np.sqrt(fan_in)
        w = jax.random.uniform(kw, (fan_out, fan_in), jnp.float32, -bound, bound)
        b = jax.random.uniform(kb, (fan_out,), jnp.float32, -bound, bound)
        params.append((w, b))
    return params


def encoder_reference(x, params):
    """Pure-JAX fp32 reference matching the PyTorch module (PyTorch-layout weights)."""
    n = len(params)
    h = x
    for i, (w, b) in enumerate(params):
        h = h @ w.T + b
        if i < n - 1:
            h = 2.0 * (jax.nn.softplus(h) - LOG2)   # carlosPlus
    return h


if __name__ == "__main__":
    key = jax.random.PRNGKey(0)
    k_x, k_p = jax.random.split(key)

    batch = 8
    n_inputs = 32
    hidden = [64, 48]
    z_dim = 16

    x = jax.random.normal(k_x, (batch, n_inputs), jnp.float32)
    params = init_encoder_params(k_p, n_inputs, z_dim, hidden)
    prepped = prepare_encoder_params(params)   # transpose + fold + pad + bf16, ONCE

    out = encoder_forward(x, prepped, z_dim)
    out = jax.block_until_ready(out)

    ref = encoder_reference(x, params)
    # bf16 MXU operands => relaxed tolerance vs. the fp32 reference
    np.testing.assert_allclose(np.asarray(out), np.asarray(ref), rtol=3e-2, atol=3e-2)

    assert out.shape == (batch, z_dim)
    print("KERNEL_OK")
</pallas_src>

<mosaic_0001>
module attributes {stable_mosaic.version = 11 : i64} {
  func.func @_fused_mlp_kernel(%arg0: i32, %arg1: memref<8x128xf32, #tpu.memory_space<vmem>>, %arg2: memref<128x128xbf16, #tpu.memory_space<vmem>>, %arg3: memref<1x128xf32, #tpu.memory_space<vmem>>, %arg4: memref<128x128xbf16, #tpu.memory_space<vmem>>, %arg5: memref<1x128xf32, #tpu.memory_space<vmem>>, %arg6: memref<128x128xbf16, #tpu.memory_space<vmem>>, %arg7: memref<1x128xf32, #tpu.memory_space<vmem>>, %arg8: memref<8x128xf32, #tpu.memory_space<vmem>>) attributes {dimension_semantics = [#tpu.dimension_semantics<parallel>], iteration_bounds = array<i64: 1>, scalar_prefetch = 0 : i64, scratch_operands = 0 : i64, tpu.core_type = #tpu.core_type<tc>, window_params = [{transform_indices = @transform_0, window_bounds = array<i64: 8, 128>}, {pipeline_mode = #tpu.pipeline_mode<synchronous>, transform_indices = @transform_1, window_bounds = array<i64: 128, 128>}, {pipeline_mode = #tpu.pipeline_mode<synchronous>, transform_indices = @transform_2, window_bounds = array<i64: 1, 128>}, {pipeline_mode = #tpu.pipeline_mode<synchronous>, transform_indices = @transform_3, window_bounds = array<i64: 128, 128>}, {pipeline_mode = #tpu.pipeline_mode<synchronous>, transform_indices = @transform_4, window_bounds = array<i64: 1, 128>}, {pipeline_mode = #tpu.pipeline_mode<synchronous>, transform_indices = @transform_5, window_bounds = array<i64: 128, 128>}, {pipeline_mode = #tpu.pipeline_mode<synchronous>, transform_indices = @transform_6, window_bounds = array<i64: 1, 128>}, {transform_indices = @transform_7, window_bounds = array<i64: 8, 128>}]} {
    %c0 = arith.constant 0 : index
    %c0_0 = arith.constant 0 : index
    %0 = vector.load %arg1[%c0, %c0_0] : memref<8x128xf32, #tpu.memory_space<vmem>>, vector<8x128xf32>
    %c0_1 = arith.constant 0 : index
    %c0_2 = arith.constant 0 : index
    %1 = vector.load %arg2[%c0_1, %c0_2] : memref<128x128xbf16, #tpu.memory_space<vmem>>, vector<128x128xbf16>
    %c0_3 = arith.constant 0 : index
    %c0_4 = arith.constant 0 : index
    %2 = vector.load %arg3[%c0_3, %c0_4] : memref<1x128xf32, #tpu.memory_space<vmem>>, vector<1x128xf32>
    %3 = arith.truncf %0 : vector<8x128xf32> to vector<8x128xbf16>
    %cst = arith.constant dense<0.000000e+00> : vector<8x128xf32>
    %4 = tpu.matmul %3, %1, %cst {dimension_numbers = #tpu.dot_dimension_numbers<[1], [0], [0], [1], [0, 0, 1, 1], [], []>} : vector<8x128xbf16>, vector<128x128xbf16>, vector<8x128xf32> -> vector<8x128xf32>
    %5 = vector.broadcast %2 : vector<1x128xf32> to vector<8x128xf32>
    %6 = arith.addf %4, %5 : vector<8x128xf32>
    %cst_5 = arith.constant 0.000000e+00 : f32
    %7 = vector.broadcast %cst_5 : f32 to vector<8x128xf32>
    %8 = arith.maximumf %6, %7 : vector<8x128xf32>
    %9 = math.absf %6 : vector<8x128xf32>
    %cst_6 = arith.constant 0.000000e+00 : f32
    %10 = vector.broadcast %cst_6 : f32 to vector<8x128xf32>
    %11 = arith.subf %10, %9 : vector<8x128xf32>
    %12 = math.exp %11 : vector<8x128xf32>
    %13 = math.log1p %12 : vector<8x128xf32>
    %14 = arith.addf %8, %13 : vector<8x128xf32>
    %c0_7 = arith.constant 0 : index
    %c0_8 = arith.constant 0 : index
    %15 = vector.load %arg4[%c0_7, %c0_8] : memref<128x128xbf16, #tpu.memory_space<vmem>>, vector<128x128xbf16>
    %c0_9 = arith.constant 0 : index
    %c0_10 = arith.constant 0 : index
    %16 = vector.load %arg5[%c0_9, %c0_10] : memref<1x128xf32, #tpu.memory_space<vmem>>, vector<1x128xf32>
    %17 = arith.truncf %14 : vector<8x128xf32> to vector<8x128xbf16>
    %cst_11 = arith.constant dense<0.000000e+00> : vector<8x128xf32>
    %18 = tpu.matmul %17, %15, %cst_11 {dimension_numbers = #tpu.dot_dimension_numbers<[1], [0], [0], [1], [0, 0, 1, 1], [], []>} : vector<8x128xbf16>, vector<128x128xbf16>, vector<8x128xf32> -> vector<8x128xf32>
    %19 = vector.broadcast %16 : vector<1x128xf32> to vector<8x128xf32>
    %20 = arith.addf %18, %19 : vector<8x128xf32>
    %cst_12 = arith.constant 0.000000e+00 : f32
    %21 = vector.broadcast %cst_12 : f32 to vector<8x128xf32>
    %22 = arith.maximumf %20, %21 : vector<8x128xf32>
    %23 = math.absf %20 : vector<8x128xf32>
    %cst_13 = arith.constant 0.000000e+00 : f32
    %24 = vector.broadcast %cst_13 : f32 to vector<8x128xf32>
    %25 = arith.subf %24, %23 : vector<8x128xf32>
    %26 = math.exp %25 : vector<8x128xf32>
    %27 = math.log1p %26 : vector<8x128xf32>
    %28 = arith.addf %22, %27 : vector<8x128xf32>
    %c0_14 = arith.constant 0 : index
    %c0_15 = arith.constant 0 : index
    %29 = vector.load %arg6[%c0_14, %c0_15] : memref<128x128xbf16, #tpu.memory_space<vmem>>, vector<128x128xbf16>
    %c0_16 = arith.constant 0 : index
    %c0_17 = arith.constant 0 : index
    %30 = vector.load %arg7[%c0_16, %c0_17] : memref<1x128xf32, #tpu.memory_space<vmem>>, vector<1x128xf32>
    %31 = arith.truncf %28 : vector<8x128xf32> to vector<8x128xbf16>
    %cst_18 = arith.constant dense<0.000000e+00> : vector<8x128xf32>
    %32 = tpu.matmul %31, %29, %cst_18 {dimension_numbers = #tpu.dot_dimension_numbers<[1], [0], [0], [1], [0, 0, 1, 1], [], []>} : vector<8x128xbf16>, vector<128x128xbf16>, vector<8x128xf32> -> vector<8x128xf32>
    %33 = vector.broadcast %30 : vector<1x128xf32> to vector<8x128xf32>
    %34 = arith.addf %32, %33 : vector<8x128xf32>
    %c0_19 = arith.constant 0 : index
    %c0_20 = arith.constant 0 : index
    %35 = vector.load %arg8[%c0_19, %c0_20] : memref<8x128xf32, #tpu.memory_space<vmem>>, vector<8x128xf32>
    tpu.vector_store %arg8[%c0_19, %c0_20], %34 {strides = array<i32>} : memref<8x128xf32, #tpu.memory_space<vmem>>, vector<8x128xf32>,
    return
  }
  func.func @transform_0(%arg0: i32) -> (i32, i32) {
    %c0_i32 = arith.constant 0 : i32
    %c0_i32_0 = arith.constant 0 : i32
    return %arg0, %c0_i32 : i32, i32
  }
  func.func @transform_1(%arg0: i32) -> (i32, i32) {
    %c0_i32 = arith.constant 0 : i32
    %c0_i32_0 = arith.constant 0 : i32
    %c0_i32_1 = arith.constant 0 : i32
    return %c0_i32, %c0_i32_0 : i32, i32
  }
  func.func @transform_2(%arg0: i32) -> (i32, i32) {
    %c0_i32 = arith.constant 0 : i32
    %c0_i32_0 = arith.constant 0 : i32
    %c0_i32_1 = arith.constant 0 : i32
    return %c0_i32, %c0_i32_0 : i32, i32
  }
  func.func @transform_3(%arg0: i32) -> (i32, i32) {
    %c0_i32 = arith.constant 0 : i32
    %c0_i32_0 = arith.constant 0 : i32
    %c0_i32_1 = arith.constant 0 : i32
    return %c0_i32, %c0_i32_0 : i32, i32
  }
  func.func @transform_4(%arg0: i32) -> (i32, i32) {
    %c0_i32 = arith.constant 0 : i32
    %c0_i32_0 = arith.constant 0 : i32
    %c0_i32_1 = arith.constant 0 : i32
    return %c0_i32, %c0_i32_0 : i32, i32
  }
  func.func @transform_5(%arg0: i32) -> (i32, i32) {
    %c0_i32 = arith.constant 0 : i32
    %c0_i32_0 = arith.constant 0 : i32
    %c0_i32_1 = arith.constant 0 : i32
    return %c0_i32, %c0_i32_0 : i32, i32
  }
  func.func @transform_6(%arg0: i32) -> (i32, i32) {
    %c0_i32 = arith.constant 0 : i32
    %c0_i32_0 = arith.constant 0 : i32
    %c0_i32_1 = arith.constant 0 : i32
    return %c0_i32, %c0_i32_0 : i32, i32
  }
  func.func @transform_7(%arg0: i32) -> (i32, i32) {
    %c0_i32 = arith.constant 0 : i32
    %c0_i32_0 = arith.constant 0 : i32
    return %arg0, %c0_i32 : i32, i32
  }
}

</mosaic_0001>

<llo_original>
// kernel: encoder_forward.1
$region0: #{encoder_forward.1}
  #allocation0 [shape = 'u32[]', space=smem, size = 0x4, offset = 0x4, fixed_abs, tag = 'smem constant byte address 0x4 - core index']
  #allocation1 [shape = 'u32[144,128]{1,0:T(1,128)}', space=vmem, size = 0x12000, scoped, tag = 'internal scratch']
  %s0 = inlined_call_operand.vmem [shape: f32[8,128], index: 0, kind: input, shape index: {}]
  %s1 = inlined_call_operand.hbm [shape: bf16[128,128], index: 1, kind: input, shape index: {}]
  %s2 = inlined_call_operand.vmem [shape: f32[1,128], index: 2, kind: input, shape index: {}]
  %s3 = inlined_call_operand.hbm [shape: bf16[128,128], index: 3, kind: input, shape index: {}]
  %s4 = inlined_call_operand.vmem [shape: f32[1,128], index: 4, kind: input, shape index: {}]
  %s5 = inlined_call_operand.hbm [shape: bf16[128,128], index: 5, kind: input, shape index: {}]
  %s6 = inlined_call_operand.vmem [shape: f32[1,128], index: 6, kind: input, shape index: {}]
  %s7 = inlined_call_operand.hbm [shape: f32[8,128], index: 7, kind: output, shape index: {}]
  %s8 = sld [smem:[#allocation0]]
  $region50: #{encoder_forward.1} parent=0
    _
  %s10 = ssub.s32 1, %s8
  %s11 = scalar_select 0, %s10, %s8
  $region1: #{encoder_forward.1} parent=0
    #allocation2 [shape = 'u8[32768]{0}', space=vmem, size = 0x8000, scoped, tag = 'input window, operand 1, single buffered']
    #allocation3 [shape = 's32[1]{0}', space=sflag, size = 0x4, scoped, tag = 'scoped memory for encoder_forward.1']
    #allocation4 [shape = 's32[1]{0}', space=sflag, size = 0x4, scoped, tag = 'scoped memory for encoder_forward.1']
    #allocation5 [shape = 'u8[32768]{0}', space=vmem, size = 0x8000, scoped, tag = 'input window, operand 3, single buffered']
    #allocation6 [shape = 's32[1]{0}', space=sflag, size = 0x4, scoped, tag = 'scoped memory for encoder_forward.1']
    #allocation7 [shape = 'u8[32768]{0}', space=vmem, size = 0x8000, scoped, tag = 'input window, operand 5, single buffered']
    #allocation8 [shape = 'u8[4096]{0}', space=vmem, size = 0x1000, scoped, tag = 'output window, operand 0, single buffered']
    %12 = vsyncpa [#allocation3], 0
    %13 = vsyncpa [#allocation6], 0
    %14 = vsyncpa [#allocation4], 0
    // Predicated region
    $region2: #{encoder_forward.1} parent=1 // pred_check
      _
    $region3: #{encoder_forward.1} parent=1 // pred_check_branch
      %16 = sbr.rel (0) target = $region5
    $region4: #{encoder_forward.1} parent=1 // pred_region
      _
    $region5: #{encoder_forward.1} parent=1 // pred_fallthru
      _
    // Predicated region
    $region6: #{encoder_forward.1} parent=1 // pred_check
      _
    $region7: #{encoder_forward.1} parent=1 // pred_check_branch
      %18 = sbr.rel (0) target = $region9
    $region8: #{encoder_forward.1} parent=1 // pred_region
      %s20 = ssub.s32 1024, 1024
      %21 = vsyncadd [#allocation3], %s20
      %s22 = sshll.u32 [#allocation2], 4
      %s23 = int_to_ptr.vmem [resolvable:$true] %s22
      %28 = dma.hbm_to_vmem [thread:$0]  %s1, 1024, %s23, [#allocation3], 64, 64, 4
    $region9: #{encoder_forward.1} parent=1 // pred_fallthru
      _
    // Predicated region
    $region10: #{encoder_forward.1} parent=1 // pred_check
      _
    $region11: #{encoder_forward.1} parent=1 // pred_check_branch
      %30 = sbr.rel (0) target = $region13
    $region12: #{encoder_forward.1} parent=1 // pred_region
      _
    $region13: #{encoder_forward.1} parent=1 // pred_fallthru
      _
    // Predicated region
    $region14: #{encoder_forward.1} parent=1 // pred_check
      _
    $region15: #{encoder_forward.1} parent=1 // pred_check_branch
      %32 = sbr.rel (0) target = $region17
    $region16: #{encoder_forward.1} parent=1 // pred_region
      %s34 = ssub.s32 1024, 1024
      %35 = vsyncadd [#allocation6], %s34
      %s36 = sshll.u32 [#allocation5], 4
      %s37 = int_to_ptr.vmem [resolvable:$true] %s36
      %42 = dma.hbm_to_vmem [thread:$0]  %s3, 1024, %s37, [#allocation6], 64, 64, 4
    $region17: #{encoder_forward.1} parent=1 // pred_fallthru
      _
    // Predicated region
    $region18: #{encoder_forward.1} parent=1 // pred_check
      _
    $region19: #{encoder_forward.1} parent=1 // pred_check_branch
      %44 = sbr.rel (0) target = $region21
    $region20: #{encoder_forward.1} parent=1 // pred_region
      _
    $region21: #{encoder_forward.1} parent=1 // pred_fallthru
      _
    // Predicated region
    $region22: #{encoder_forward.1} parent=1 // pred_check
      _
    $region23: #{encoder_forward.1} parent=1 // pred_check_branch
      %46 = sbr.rel (0) target = $region25
    $region24: #{encoder_forward.1} parent=1 // pred_region
      %s48 = ssub.s32 1024, 1024
      %49 = vsyncadd [#allocation6], %s48
      %s50 = sshll.u32 [#allocation7], 4
      %s51 = int_to_ptr.vmem [resolvable:$true] %s50
      %56 = dma.hbm_to_vmem [thread:$0]  %s5, 1024, %s51, [#allocation6], 64, 64, 4
    $region25: #{encoder_forward.1} parent=1 // pred_fallthru
      _
    // Predicated region
    $region26: #{encoder_forward.1} parent=1 // pred_check
      _
    $region27: #{encoder_forward.1} parent=1 // pred_check_branch
      %58 = sbr.rel (0) target = $region29
    $region28: #{encoder_forward.1} parent=1 // pred_region
      _
    $region29: #{encoder_forward.1} parent=1 // pred_fallthru
      _
    // Predicated region
    $region30: #{encoder_forward.1} parent=1 // pred_check
      _
    $region31: #{encoder_forward.1} parent=1 // pred_check_branch
      %60 = sbr.rel (0) target = $region33
    $region32: #{encoder_forward.1} parent=1 // pred_region
      %61 = dma.done [#allocation3], 1024
    $region33: #{encoder_forward.1} parent=1 // pred_fallthru
      _
    // Predicated region
    $region34: #{encoder_forward.1} parent=1 // pred_check
      _
    $region35: #{encoder_forward.1} parent=1 // pred_check_branch
      %63 = sbr.rel (0) target = $region37
    $region36: #{encoder_forward.1} parent=1 // pred_region
      %64 = dma.done [#allocation6], 1024
    $region37: #{encoder_forward.1} parent=1 // pred_fallthru
      _
    // Predicated region
    $region38: #{encoder_forward.1} parent=1 // pred_check
      _
    $region39: #{encoder_forward.1} parent=1 // pred_check_branch
      %66 = sbr.rel (0) target = $region41
    $region40: #{encoder_forward.1} parent=1 // pred_region
      %67 = dma.done [#allocation6], 1024
    $region41: #{encoder_forward.1} parent=1 // pred_fallthru
      _
    %v69 = vld [vmem:[%s0] sm:$0xff]
    %v70 = vld [vmem:[#allocation2] sm:$0xf]
    %v71 = vld [vmem:[#allocation2 + $0x4] sm:$0xf]
    %v72 = vld [vmem:[#allocation2 + $0x8] sm:$0xf]
    %v73 = vld [vmem:[#allocation2 + $0xc] sm:$0xf]
    %v74 = vld [vmem:[#allocation2 + $0x10] sm:$0xf]
    %v75 = vld [vmem:[#allocation2 + $0x14] sm:$0xf]
    %v76 = vld [vmem:[#allocation2 + $0x18] sm:$0xf]
    %v77 = vld [vmem:[#allocation2 + $0x1c] sm:$0xf]
    %v78 = vld [vmem:[#allocation2 + $0x20] sm:$0xf]
    %v79 = vld [vmem:[#allocation2 + $0x24] sm:$0xf]
    %v80 = vld [vmem:[#allocation2 + $0x28] sm:$0xf]
    %v81 = vld [vmem:[#allocation2 + $0x2c] sm:$0xf]
    %v82 = vld [vmem:[#allocation2 + $0x30] sm:$0xf]
    %v83 = vld [vmem:[#allocation2 + $0x34] sm:$0xf]
    %v84 = vld [vmem:[#allocation2 + $0x38] sm:$0xf]
    %v85 = vld [vmem:[#allocation2 + $0x3c] sm:$0xf]
    %v86 = vld [vmem:[%s2] sm:$0x1]
    %v87 = vpack.c.bf16 %v69, %v69
    %v89 = vlaneseq
    %v90 = vshrl.u32 %v89, 7
    %v91 = vsub.s32 0, %v90
    %v92 = vrot.slane %v86, %v91
    %v110 = vunpack.c.l.b16 %v70
    %v111 = vunpack.c.l.b16 %v71
    %v112 = vunpack.c.l.b16 %v72
    %v113 = vunpack.c.l.b16 %v73
    %v114 = vunpack.c.l.b16 %v74
    %v115 = vunpack.c.l.b16 %v75
    %v116 = vunpack.c.l.b16 %v76
    %v117 = vunpack.c.l.b16 %v77
    %v118 = vunpack.c.l.b16 %v78
    %v119 = vunpack.c.l.b16 %v79
    %v120 = vunpack.c.l.b16 %v80
    %v121 = vunpack.c.l.b16 %v81
    %v122 = vunpack.c.l.b16 %v82
    %v123 = vunpack.c.l.b16 %v83
    %v124 = vunpack.c.l.b16 %v84
    %v125 = vunpack.c.l.b16 %v85
    %v126 = vpack.c.b16 %v111, %v110
    %v127 = vpack.c.b16 %v113, %v112
    %v128 = vpack.c.b16 %v115, %v114
    %v129 = vpack.c.b16 %v117, %v116
    %v130 = vpack.c.b16 %v119, %v118
    %v131 = vpack.c.b16 %v121, %v120
    %v132 = vpack.c.b16 %v123, %v122
    %v133 = vpack.c.b16 %v125, %v124
    %142 = vmatprep.subr.bf16.mxu0 0
    %143 = vmatpush1.bf16.msra.mxu0 %v126
    %144 = vmatprep.subr.bf16.mxu0 0
    %145 = vmatpush1.bf16.msra.mxu0 %v127
    %146 = vmatprep.subr.bf16.mxu0 0
    %147 = vmatpush1.bf16.msra.mxu0 %v128
    %148 = vmatprep.subr.bf16.mxu0 0
    %149 = vmatpush1.bf16.msra.mxu0 %v129
    %150 = vmatprep.subr.bf16.mxu0 0
    %151 = vmatpush1.bf16.msra.mxu0 %v130
    %152 = vmatprep.subr.bf16.mxu0 0
    %153 = vmatpush1.bf16.msra.mxu0 %v131
    %154 = vmatprep.subr.bf16.mxu0 0
    %155 = vmatpush1.bf16.msra.mxu0 %v132
    %156 = vmatprep.subr.bf16.mxu0 0
    %157 = vmatpush1.bf16.msra.mxu0 %v133
    %158 = vmatprep.subr.bf16.mxu0 0
    %159 = vmatpush1.bf16.msra.mxu0 0
    %160 = vmatprep.subr.bf16.mxu0 0
    %161 = vmatpush1.bf16.msra.mxu0 0
    %162 = vmatprep.subr.bf16.mxu0 0
    %163 = vmatpush1.bf16.msra.mxu0 0
    %164 = vmatprep.subr.bf16.mxu0 0
    %165 = vmatpush1.bf16.msra.mxu0 0
    %166 = vmatprep.subr.bf16.mxu0 0
    %167 = vmatpush1.bf16.msra.mxu0 0
    %168 = vmatprep.subr.bf16.mxu0 0
    %169 = vmatpush1.bf16.msra.mxu0 0
    %170 = vmatprep.subr.bf16.mxu0 0
    %171 = vmatpush1.bf16.msra.mxu0 0
    %172 = vmatprep.subr.bf16.mxu0 0
    %173 = vmatpush1.bf16.msra.mxu0 0
    %174 = vmatprep.mubr.bf16.mxu0 0
    %175 = vmatmul.mubr.bf16.gmra.mrb[0].mxu0 %v87
    %v176 = vpop.f32.mrb[0].mxu0
    %v177 = vadd.f32 %v92, %v176
    %v178 = vpop.f32.mrb[0].mxu0
    %v179 = vpop.f32.mrb[0].mxu0
    %v180 = vpop.f32.mrb[0].mxu0
    %181 = vdwg.mxu0
    %v182 = vmax.f32 %v177, 0.0
    %v183 = vand.u32 2147483647, %v177
    %v184 = vsub.f32 0.0, %v183
    %v185 = vmul.f32 %v184, 1.442695
    %v186 = vpow.pop %v185
    %v187 = vadd.f32 %v186, 1.0
    %v188 = vlog2.pop %v187
    %v189 = vmul.f32 %v188, 0.6931472
    %v190 = vmul.f32 -0.5, %v186
    %v191 = vadd.f32 %v190, 1.0
    %v192 = vmul.f32 %v191, %v186
    %v193 = vand.u32 2147483647, %v186
    %vm194 = vcmp.lt.f32.partialorder %v193, 0.0004427343
    %v195 = vsel %vm194, %v192, %v189
    %v196 = vadd.f32 %v182, %v195
    %v197 = vld [vmem:[#allocation5] sm:$0xf]
    %v198 = vld [vmem:[#allocation5 + $0x4] sm:$0xf]
    %v199 = vld [vmem:[#allocation5 + $0x8] sm:$0xf]
    %v200 = vld [vmem:[#allocation5 + $0xc] sm:$0xf]
    %v201 = vld [vmem:[#allocation5 + $0x10] sm:$0xf]
    %v202 = vld [vmem:[#allocation5 + $0x14] sm:$0xf]
    %v203 = vld [vmem:[#allocation5 + $0x18] sm:$0xf]
    %v204 = vld [vmem:[#allocation5 + $0x1c] sm:$0xf]
    %v205 = vld [vmem:[#allocation5 + $0x20] sm:$0xf]
    %v206 = vld [vmem:[#allocation5 + $0x24] sm:$0xf]
    %v207 = vld [vmem:[#allocation5 + $0x28] sm:$0xf]
    %v208 = vld [vmem:[#allocation5 + $0x2c] sm:$0xf]
    %v209 = vld [vmem:[#allocation5 + $0x30] sm:$0xf]
    %v210 = vld [vmem:[#allocation5 + $0x34] sm:$0xf]
    %v211 = vld [vmem:[#allocation5 + $0x38] sm:$0xf]
    %v212 = vld [vmem:[#allocation5 + $0x3c] sm:$0xf]
    %v213 = vld [vmem:[%s4] sm:$0x1]
    %v214 = vpack.c.bf16 %v196, %v196
    %v216 = vlaneseq
    %v217 = vshrl.u32 %v216, 7
    %v218 = vsub.s32 0, %v217
    %v219 = vrot.slane %v213, %v218
    %v237 = vunpack.c.l.b16 %v197
    %v238 = vunpack.c.l.b16 %v198
    %v239 = vunpack.c.l.b16 %v199
    %v240 = vunpack.c.l.b16 %v200
    %v241 = vunpack.c.l.b16 %v201
    %v242 = vunpack.c.l.b16 %v202
    %v243 = vunpack.c.l.b16 %v203
    %v244 = vunpack.c.l.b16 %v204
    %v245 = vunpack.c.l.b16 %v205
    %v246 = vunpack.c.l.b16 %v206
    %v247 = vunpack.c.l.b16 %v207
    %v248 = vunpack.c.l.b16 %v208
    %v249 = vunpack.c.l.b16 %v209
    %v250 = vunpack.c.l.b16 %v210
    %v251 = vunpack.c.l.b16 %v211
    %v252 = vunpack.c.l.b16 %v212
    %v253 = vpack.c.b16 %v238, %v237
    %v254 = vpack.c.b16 %v240, %v239
    %v255 = vpack.c.b16 %v242, %v241
    %v256 = vpack.c.b16 %v244, %v243
    %v257 = vpack.c.b16 %v246, %v245
    %v258 = vpack.c.b16 %v248, %v247
    %v259 = vpack.c.b16 %v250, %v249
    %v260 = vpack.c.b16 %v252, %v251
    %269 = vmatprep.subr.bf16.mxu0 0
    %270 = vmatpush1.bf16.msra.mxu0 %v253
    %271 = vmatprep.subr.bf16.mxu0 0
    %272 = vmatpush1.bf16.msra.mxu0 %v254
    %273 = vmatprep.subr.bf16.mxu0 0
    %274 = vmatpush1.bf16.msra.mxu0 %v255
    %275 = vmatprep.subr.bf16.mxu0 0
    %276 = vmatpush1.bf16.msra.mxu0 %v256
    %277 = vmatprep.subr.bf16.mxu0 0
    %278 = vmatpush1.bf16.msra.mxu0 %v257
    %279 = vmatprep.subr.bf16.mxu0 0
    %280 = vmatpush1.bf16.msra.mxu0 %v258
    %281 = vmatprep.subr.bf16.mxu0 0
    %282 = vmatpush1.bf16.msra.mxu0 %v259
    %283 = vmatprep.subr.bf16.mxu0 0
    %284 = vmatpush1.bf16.msra.mxu0 %v260
    %285 = vmatprep.subr.bf16.mxu0 0
    %286 = vmatpush1.bf16.msra.mxu0 0
    %287 = vmatprep.subr.bf16.mxu0 0
    %288 = vmatpush1.bf16.msra.mxu0 0
    %289 = vmatprep.subr.bf16.mxu0 0
    %290 = vmatpush1.bf16.msra.mxu0 0
    %291 = vmatprep.subr.bf16.mxu0 0
    %292 = vmatpush1.bf16.msra.mxu0 0
    %293 = vmatprep.subr.bf16.mxu0 0
    %294 = vmatpush1.bf16.msra.mxu0 0
    %295 = vmatprep.subr.bf16.mxu0 0
    %296 = vmatpush1.bf16.msra.mxu0 0
    %297 = vmatprep.subr.bf16.mxu0 0
    %298 = vmatpush1.bf16.msra.mxu0 0
    %299 = vmatprep.subr.bf16.mxu0 0
    %300 = vmatpush1.bf16.msra.mxu0 0
    %301 = vmatprep.mubr.bf16.mxu0 0
    %302 = vmatmul.mubr.bf16.gmra.mrb[0].mxu0 %v214
    %v303 = vpop.f32.mrb[0].mxu0
    %v304 = vadd.f32 %v219, %v303
    %v305 = vpop.f32.mrb[0].mxu0
    %v306 = vpop.f32.mrb[0].mxu0
    %v307 = vpop.f32.mrb[0].mxu0
    %308 = vdwg.mxu0
    %v309 = vmax.f32 %v304, 0.0
    %v310 = vand.u32 2147483647, %v304
    %v311 = vsub.f32 0.0, %v310
    %v312 = vmul.f32 %v311, 1.442695
    %v313 = vpow.pop %v312
    %v314 = vadd.f32 %v313, 1.0
    %v315 = vlog2.pop %v314
    %v316 = vmul.f32 %v315, 0.6931472
    %v317 = vmul.f32 -0.5, %v313
    %v318 = vadd.f32 %v317, 1.0
    %v319 = vmul.f32 %v318, %v313
    %v320 = vand.u32 2147483647, %v313
    %vm321 = vcmp.lt.f32.partialorder %v320, 0.0004427343
    %v322 = vsel %vm321, %v319, %v316
    %v323 = vadd.f32 %v309, %v322
    %v324 = vld [vmem:[#allocation7] sm:$0xf]
    %v325 = vld [vmem:[#allocation7 + $0x4] sm:$0xf]
    %v326 = vld [vmem:[#allocation7 + $0x8] sm:$0xf]
    %v327 = vld [vmem:[#allocation7 + $0xc] sm:$0xf]
    %v328 = vld [vmem:[#allocation7 + $0x10] sm:$0xf]
    %v329 = vld [vmem:[#allocation7 + $0x14] sm:$0xf]
    %v330 = vld [vmem:[#allocation7 + $0x18] sm:$0xf]
    %v331 = vld [vmem:[#allocation7 + $0x1c] sm:$0xf]
    %v332 = vld [vmem:[#allocation7 + $0x20] sm:$0xf]
    %v333 = vld [vmem:[#allocation7 + $0x24] sm:$0xf]
    %v334 = vld [vmem:[#allocation7 + $0x28] sm:$0xf]
    %v335 = vld [vmem:[#allocation7 + $0x2c] sm:$0xf]
    %v336 = vld [vmem:[#allocation7 + $0x30] sm:$0xf]
    %v337 = vld [vmem:[#allocation7 + $0x34] sm:$0xf]
    %v338 = vld [vmem:[#allocation7 + $0x38] sm:$0xf]
    %v339 = vld [vmem:[#allocation7 + $0x3c] sm:$0xf]
    %v340 = vld [vmem:[%s6] sm:$0x1]
    %v341 = vpack.c.bf16 %v323, %v323
    %v343 = vlaneseq
    %v344 = vshrl.u32 %v343, 7
    %v345 = vsub.s32 0, %v344
    %v346 = vrot.slane %v340, %v345
    %v364 = vunpack.c.l.b16 %v324
    %v365 = vunpack.c.l.b16 %v325
    %v366 = vunpack.c.l.b16 %v326
    %v367 = vunpack.c.l.b16 %v327
    %v368 = vunpack.c.l.b16 %v328
    %v369 = vunpack.c.l.b16 %v329
    %v370 = vunpack.c.l.b16 %v330
    %v371 = vunpack.c.l.b16 %v331
    %v372 = vunpack.c.l.b16 %v332
    %v373 = vunpack.c.l.b16 %v333
    %v374 = vunpack.c.l.b16 %v334
    %v375 = vunpack.c.l.b16 %v335
    %v376 = vunpack.c.l.b16 %v336
    %v377 = vunpack.c.l.b16 %v337
    %v378 = vunpack.c.l.b16 %v338
    %v379 = vunpack.c.l.b16 %v339
    %v380 = vpack.c.b16 %v365, %v364
    %v381 = vpack.c.b16 %v367, %v366
    %v382 = vpack.c.b16 %v369, %v368
    %v383 = vpack.c.b16 %v371, %v370
    %v384 = vpack.c.b16 %v373, %v372
    %v385 = vpack.c.b16 %v375, %v374
    %v386 = vpack.c.b16 %v377, %v376
    %v387 = vpack.c.b16 %v379, %v378
    %396 = vmatprep.subr.bf16.mxu0 0
    %397 = vmatpush1.bf16.msra.mxu0 %v380
    %398 = vmatprep.subr.bf16.mxu0 0
    %399 = vmatpush1.bf16.msra.mxu0 %v381
    %400 = vmatprep.subr.bf16.mxu0 0
    %401 = vmatpush1.bf16.msra.mxu0 %v382
    %402 = vmatprep.subr.bf16.mxu0 0
    %403 = vmatpush1.bf16.msra.mxu0 %v383
    %404 = vmatprep.subr.bf16.mxu0 0
    %405 = vmatpush1.bf16.msra.mxu0 %v384
    %406 = vmatprep.subr.bf16.mxu0 0
    %407 = vmatpush1.bf16.msra.mxu0 %v385
    %408 = vmatprep.subr.bf16.mxu0 0
    %409 = vmatpush1.bf16.msra.mxu0 %v386
    %410 = vmatprep.subr.bf16.mxu0 0
    %411 = vmatpush1.bf16.msra.mxu0 %v387
    %412 = vmatprep.subr.bf16.mxu0 0
    %413 = vmatpush1.bf16.msra.mxu0 0
    %414 = vmatprep.subr.bf16.mxu0 0
    %415 = vmatpush1.bf16.msra.mxu0 0
    %416 = vmatprep.subr.bf16.mxu0 0
    %417 = vmatpush1.bf16.msra.mxu0 0
    %418 = vmatprep.subr.bf16.mxu0 0
    %419 = vmatpush1.bf16.msra.mxu0 0
    %420 = vmatprep.subr.bf16.mxu0 0
    %421 = vmatpush1.bf16.msra.mxu0 0
    %422 = vmatprep.subr.bf16.mxu0 0
    %423 = vmatpush1.bf16.msra.mxu0 0
    %424 = vmatprep.subr.bf16.mxu0 0
    %425 = vmatpush1.bf16.msra.mxu0 0
    %426 = vmatprep.subr.bf16.mxu0 0
    %427 = vmatpush1.bf16.msra.mxu0 0
    %428 = vmatprep.mubr.bf16.mxu0 0
    %429 = vmatmul.mubr.bf16.gmra.mrb[0].mxu0 %v341
    %v430 = vpop.f32.mrb[0].mxu0
    %v431 = vadd.f32 %v346, %v430
    %v432 = vpop.f32.mrb[0].mxu0
    %v433 = vpop.f32.mrb[0].mxu0
    %v434 = vpop.f32.mrb[0].mxu0
    %435 = vdwg.mxu0
    %436 = vst [vmem:[#allocation8] sm:$0xff] %v431
    // Predicated region
    $region42: #{encoder_forward.1} parent=1 // pred_check
      _
    $region43: #{encoder_forward.1} parent=1 // pred_check_branch
      %438 = sbr.rel (0) target = $region45
    $region44: #{encoder_forward.1} parent=1 // pred_region
      %s440 = ssub.s32 128, 128
      %441 = vsyncadd [#allocation4], %s440
      %s443 = sshll.u32 [#allocation8], 4
      %s444 = int_to_ptr.vmem [resolvable:$true] %s443
      %446 = dma.vmem_to_hbm [thread:$0]  %s444, 128, %s7, [#allocation4]
    $region45: #{encoder_forward.1} parent=1 // pred_fallthru
      _
    // Predicated region
    $region46: #{encoder_forward.1} parent=1 // pred_check
      _
    $region47: #{encoder_forward.1} parent=1 // pred_check_branch
      %448 = sbr.rel (0) target = $region49
    $region48: #{encoder_forward.1} parent=1 // pred_region
      %449 = dma.done [#allocation4], 128
    $region49: #{encoder_forward.1} parent=1 // pred_fallthru
      _
    %450 = vsyncpa [#allocation3], 1
    %451 = vsyncpa [#allocation6], 1
    %452 = vsyncpa [#allocation4], 1

</llo_original>
